<compile_context>
chip_gen: v7x
topology: tpu7x:2x2x1
jax: 0.10.0
libtpu: 0.0.40
codegen_flags: <defaults>
</compile_context>

<pallas_src>
import functools

import jax
import jax.numpy as jnp
from jax.experimental import pallas as pl
from jax.experimental.pallas import tpu as pltpu


def _round_up(x: int, m: int) -> int:
    return (x + m - 1) // m * m


def _mlp_kernel(x_ref, w1_ref, b1_ref, w2_ref, b2_ref, out_ref, act_ref):
    # fc1: (TB, IN) @ (IN, H) on the MXU, bf16 inputs, f32 accumulation.
    h = jnp.dot(x_ref[...], w1_ref[...], preferred_element_type=jnp.float32)
    h = h + b1_ref[...]                       # f32 bias add (VPU)
    a = jax.nn.sigmoid(h)                     # f32 sigmoid (EUP exp + recip)
    act_ref[...] = a.astype(act_ref.dtype)    # lane-dense (TB, H_PAD) store
    # fc2: (TB, H) @ (H, C). Padded hidden rows of w2 are zero, so the
    # sigmoid(0)=0.5 values in padded act columns contribute nothing.
    o = jnp.dot(a.astype(w2_ref.dtype), w2_ref[...],
                preferred_element_type=jnp.float32)
    o = o + b2_ref[...]
    out_ref[...] = o.astype(out_ref.dtype)    # lane-dense (TB, C_PAD) store


@functools.partial(jax.jit, static_argnames=())
def layer3net_forward(x, w1, b1, w2, b2):
    """Pallas forward for Layer3Net.

    x : (B, input_size)        f32
    w1: (input_size, hidden)   f32   (transposed from torch's (out, in))
    b1: (hidden,)              f32
    w2: (hidden, num_classes)  f32
    b2: (num_classes,)         f32
    returns (out (B, num_classes) f32, activations (B, hidden) f32)
    """
    B, in_sz = x.shape
    hidden = w1.shape[1]
    num_classes = w2.shape[1]

    # --- pad feature dims to lane width (128), batch tile to sublane (8) ---
    LANE = 128
    in_p = _round_up(in_sz, LANE)
    h_p = _round_up(hidden, LANE)
    c_p = _round_up(num_classes, LANE)

    TB = 512 if B >= 512 else _round_up(B, 8)   # batch tile (rows per grid step)
    b_p = _round_up(B, TB)

    # Zero padding: padded x cols x padded w1 rows -> 0 contribution; padded w2
    # rows zero out the sigmoid(0)=0.5 garbage from padded hidden columns.
    x_pad = jnp.pad(x, ((0, b_p - B), (0, in_p - in_sz))).astype(jnp.bfloat16)
    w1_pad = jnp.pad(w1, ((0, in_p - in_sz), (0, h_p - hidden))).astype(jnp.bfloat16)
    b1_pad = jnp.pad(b1, (0, h_p - hidden)).reshape(1, h_p).astype(jnp.float32)
    w2_pad = jnp.pad(w2, ((0, h_p - hidden), (0, c_p - num_classes))).astype(jnp.bfloat16)
    b2_pad = jnp.pad(b2, (0, c_p - num_classes)).reshape(1, c_p).astype(jnp.float32)

    grid = (b_p // TB,)

    out_pad, act_pad = pl.pallas_call(
        _mlp_kernel,
        out_shape=(
            jax.ShapeDtypeStruct((b_p, c_p), jnp.float32),
            jax.ShapeDtypeStruct((b_p, h_p), jnp.float32),
        ),
        grid=grid,
        in_specs=[
            pl.BlockSpec((TB, in_p), lambda i: (i, 0)),    # x: tiled over batch
            pl.BlockSpec((in_p, h_p), lambda i: (0, 0)),   # w1: VMEM-resident
            pl.BlockSpec((1, h_p), lambda i: (0, 0)),      # b1: VMEM-resident
            pl.BlockSpec((h_p, c_p), lambda i: (0, 0)),    # w2: VMEM-resident
            pl.BlockSpec((1, c_p), lambda i: (0, 0)),      # b2: VMEM-resident
        ],
        out_specs=(
            pl.BlockSpec((TB, c_p), lambda i: (i, 0)),     # out: lane-dense
            pl.BlockSpec((TB, h_p), lambda i: (i, 0)),     # act: lane-dense
        ),
        compiler_params=pltpu.CompilerParams(
            dimension_semantics=("parallel",),             # v7x 2-TC sharding
            vmem_limit_bytes=32 * 1024 * 1024,             # fits v7x 64 MiB phys
        ),
    )(x_pad, w1_pad, b1_pad, w2_pad, b2_pad)

    # Slice back to the true (unpadded) shapes.
    out = out_pad[:B, :num_classes]
    act = act_pad[:B, :hidden]
    return out, act


if __name__ == "__main__":
    # Small shapes consistent with the module: Linear(input, hidden), Linear(hidden, classes).
    B, input_size, hidden_size, num_classes = 8, 32, 32, 16

    key = jax.random.PRNGKey(0)
    kx, kw1, kb1, kw2, kb2 = jax.random.split(key, 5)

    x = jax.random.normal(kx, (B, input_size), dtype=jnp.float32)

    # Deterministic param init matching nn.Linear's fan-in uniform scaling.
    lim1 = 1.0 / (input_size ** 0.5)
    lim2 = 1.0 / (hidden_size ** 0.5)
    # Stored as (in, out) — transpose of torch's (out, in) weight layout.
    w1 = jax.random.uniform(kw1, (input_size, hidden_size), jnp.float32, -lim1, lim1)
    b1 = jax.random.uniform(kb1, (hidden_size,), jnp.float32, -lim1, lim1)
    w2 = jax.random.uniform(kw2, (hidden_size, num_classes), jnp.float32, -lim2, lim2)
    b2 = jax.random.uniform(kb2, (num_classes,), jnp.float32, -lim2, lim2)

    out, act = layer3net_forward(x, w1, b1, w2, b2)
    jax.block_until_ready((out, act))

    assert out.shape == (B, num_classes) and act.shape == (B, hidden_size)

    # Reference 1: pure f32 (loose tolerance accounts for bf16 matmul inputs).
    act_f32 = jax.nn.sigmoid(x @ w1 + b1)
    out_f32 = act_f32 @ w2 + b2
    assert jnp.allclose(act, act_f32, atol=5e-2), "activation mismatch vs f32 ref"
    assert jnp.allclose(out, out_f32, atol=5e-2), "output mismatch vs f32 ref"

    # Reference 2: bf16-matched JAX reference (tight tolerance).
    xb, w1b, w2b = (t.astype(jnp.bfloat16) for t in (x, w1, w2))
    act_bf = jax.nn.sigmoid(
        jnp.dot(xb, w1b, preferred_element_type=jnp.float32) + b1)
    out_bf = jnp.dot(act_bf.astype(jnp.bfloat16), w2b,
                     preferred_element_type=jnp.float32) + b2
    assert jnp.allclose(act, act_bf, atol=1e-3), "activation mismatch vs bf16 ref"
    assert jnp.allclose(out, out_bf, atol=1e-3), "output mismatch vs bf16 ref"

    print("KERNEL_OK")
</pallas_src>

<mosaic_0001>
module attributes {stable_mosaic.version = 11 : i64} {
  func.func @_mlp_kernel(%arg0: i32, %arg1: memref<8x128xbf16, #tpu.memory_space<vmem>>, %arg2: memref<128x128xbf16, #tpu.memory_space<vmem>>, %arg3: memref<1x128xf32, #tpu.memory_space<vmem>>, %arg4: memref<128x128xbf16, #tpu.memory_space<vmem>>, %arg5: memref<1x128xf32, #tpu.memory_space<vmem>>, %arg6: memref<8x128xf32, #tpu.memory_space<vmem>>, %arg7: memref<8x128xf32, #tpu.memory_space<vmem>>) attributes {dimension_semantics = [#tpu.dimension_semantics<parallel>], iteration_bounds = array<i64: 1>, scalar_prefetch = 0 : i64, scratch_operands = 0 : i64, tpu.core_type = #tpu.core_type<tc>, window_params = [{transform_indices = @transform_0, window_bounds = array<i64: 8, 128>}, {pipeline_mode = #tpu.pipeline_mode<synchronous>, transform_indices = @transform_1, window_bounds = array<i64: 128, 128>}, {pipeline_mode = #tpu.pipeline_mode<synchronous>, transform_indices = @transform_2, window_bounds = array<i64: 1, 128>}, {pipeline_mode = #tpu.pipeline_mode<synchronous>, transform_indices = @transform_3, window_bounds = array<i64: 128, 128>}, {pipeline_mode = #tpu.pipeline_mode<synchronous>, transform_indices = @transform_4, window_bounds = array<i64: 1, 128>}, {transform_indices = @transform_5, window_bounds = array<i64: 8, 128>}, {transform_indices = @transform_6, window_bounds = array<i64: 8, 128>}]} {
    %c0 = arith.constant 0 : index
    %c0_0 = arith.constant 0 : index
    %0 = vector.load %arg1[%c0, %c0_0] : memref<8x128xbf16, #tpu.memory_space<vmem>>, vector<8x128xbf16>
    %c0_1 = arith.constant 0 : index
    %c0_2 = arith.constant 0 : index
    %1 = vector.load %arg2[%c0_1, %c0_2] : memref<128x128xbf16, #tpu.memory_space<vmem>>, vector<128x128xbf16>
    %cst = arith.constant dense<0.000000e+00> : vector<8x128xf32>
    %2 = tpu.matmul %0, %1, %cst {dimension_numbers = #tpu.dot_dimension_numbers<[1], [0], [0], [1], [0, 0, 1, 1], [], []>} : vector<8x128xbf16>, vector<128x128xbf16>, vector<8x128xf32> -> vector<8x128xf32>
    %c0_3 = arith.constant 0 : index
    %c0_4 = arith.constant 0 : index
    %3 = vector.load %arg3[%c0_3, %c0_4] : memref<1x128xf32, #tpu.memory_space<vmem>>, vector<1x128xf32>
    %4 = vector.broadcast %3 : vector<1x128xf32> to vector<8x128xf32>
    %5 = arith.addf %2, %4 : vector<8x128xf32>
    %6 = arith.negf %5 : vector<8x128xf32>
    %7 = math.exp %6 : vector<8x128xf32>
    %cst_5 = arith.constant 1.000000e+00 : f32
    %8 = vector.broadcast %cst_5 : f32 to vector<8x128xf32>
    %9 = arith.addf %8, %7 : vector<8x128xf32>
    %10 = arith.divf %8, %9 : vector<8x128xf32>
    %c0_6 = arith.constant 0 : index
    %c0_7 = arith.constant 0 : index
    %11 = vector.load %arg7[%c0_6, %c0_7] : memref<8x128xf32, #tpu.memory_space<vmem>>, vector<8x128xf32>
    tpu.vector_store %arg7[%c0_6, %c0_7], %10 {strides = array<i32>} : memref<8x128xf32, #tpu.memory_space<vmem>>, vector<8x128xf32>,
    %12 = arith.truncf %10 : vector<8x128xf32> to vector<8x128xbf16>
    %c0_8 = arith.constant 0 : index
    %c0_9 = arith.constant 0 : index
    %13 = vector.load %arg4[%c0_8, %c0_9] : memref<128x128xbf16, #tpu.memory_space<vmem>>, vector<128x128xbf16>
    %cst_10 = arith.constant dense<0.000000e+00> : vector<8x128xf32>
    %14 = tpu.matmul %12, %13, %cst_10 {dimension_numbers = #tpu.dot_dimension_numbers<[1], [0], [0], [1], [0, 0, 1, 1], [], []>} : vector<8x128xbf16>, vector<128x128xbf16>, vector<8x128xf32> -> vector<8x128xf32>
    %c0_11 = arith.constant 0 : index
    %c0_12 = arith.constant 0 : index
    %15 = vector.load %arg5[%c0_11, %c0_12] : memref<1x128xf32, #tpu.memory_space<vmem>>, vector<1x128xf32>
    %16 = vector.broadcast %15 : vector<1x128xf32> to vector<8x128xf32>
    %17 = arith.addf %14, %16 : vector<8x128xf32>
    %c0_13 = arith.constant 0 : index
    %c0_14 = arith.constant 0 : index
    %18 = vector.load %arg6[%c0_13, %c0_14] : memref<8x128xf32, #tpu.memory_space<vmem>>, vector<8x128xf32>
    tpu.vector_store %arg6[%c0_13, %c0_14], %17 {strides = array<i32>} : memref<8x128xf32, #tpu.memory_space<vmem>>, vector<8x128xf32>,
    return
  }
  func.func @transform_0(%arg0: i32) -> (i32, i32) {
    %c0_i32 = arith.constant 0 : i32
    %c0_i32_0 = arith.constant 0 : i32
    return %arg0, %c0_i32 : i32, i32
  }
  func.func @transform_1(%arg0: i32) -> (i32, i32) {
    %c0_i32 = arith.constant 0 : i32
    %c0_i32_0 = arith.constant 0 : i32
    %c0_i32_1 = arith.constant 0 : i32
    return %c0_i32, %c0_i32_0 : i32, i32
  }
  func.func @transform_2(%arg0: i32) -> (i32, i32) {
    %c0_i32 = arith.constant 0 : i32
    %c0_i32_0 = arith.constant 0 : i32
    %c0_i32_1 = arith.constant 0 : i32
    return %c0_i32, %c0_i32_0 : i32, i32
  }
  func.func @transform_3(%arg0: i32) -> (i32, i32) {
    %c0_i32 = arith.constant 0 : i32
    %c0_i32_0 = arith.constant 0 : i32
    %c0_i32_1 = arith.constant 0 : i32
    return %c0_i32, %c0_i32_0 : i32, i32
  }
  func.func @transform_4(%arg0: i32) -> (i32, i32) {
    %c0_i32 = arith.constant 0 : i32
    %c0_i32_0 = arith.constant 0 : i32
    %c0_i32_1 = arith.constant 0 : i32
    return %c0_i32, %c0_i32_0 : i32, i32
  }
  func.func @transform_5(%arg0: i32) -> (i32, i32) {
    %c0_i32 = arith.constant 0 : i32
    %c0_i32_0 = arith.constant 0 : i32
    return %arg0, %c0_i32 : i32, i32
  }
  func.func @transform_6(%arg0: i32) -> (i32, i32) {
    %c0_i32 = arith.constant 0 : i32
    %c0_i32_0 = arith.constant 0 : i32
    return %arg0, %c0_i32 : i32, i32
  }
}

</mosaic_0001>

<llo_original>
// kernel: layer3net_forward.1
$region0: #{layer3net_forward.1}
  #allocation0 [shape = 'u32[]', space=smem, size = 0x4, offset = 0x4, fixed_abs, tag = 'smem constant byte address 0x4 - core index']
  #allocation1 [shape = 'u32[144,128]{1,0:T(1,128)}', space=vmem, size = 0x12000, scoped, tag = 'internal scratch']
  %s0 = inlined_call_operand.vmem [shape: bf16[8,128], index: 0, kind: input, shape index: {}]
  %s1 = inlined_call_operand.vmem [shape: bf16[128,128], index: 1, kind: input, shape index: {}]
  %s2 = inlined_call_operand.vmem [shape: f32[1,128], index: 2, kind: input, shape index: {}]
  %s3 = inlined_call_operand.vmem [shape: bf16[128,128], index: 3, kind: input, shape index: {}]
  %s4 = inlined_call_operand.vmem [shape: f32[1,128], index: 4, kind: input, shape index: {}]
  %s5 = inlined_call_operand.hbm [shape: f32[8,128], index: 5, kind: output, shape index: {0}]
  %s6 = inlined_call_operand.hbm [shape: f32[8,128], index: 6, kind: output, shape index: {1}]
  %7 = xla_tuple %s5, %s6
  %s8 = sld [smem:[#allocation0]]
  $region38: #{layer3net_forward.1} parent=0
    _
  %s10 = ssub.s32 1, %s8
  %s11 = scalar_select 0, %s10, %s8
  $region1: #{layer3net_forward.1} parent=0
    #allocation2 [shape = 'u8[4096]{0}', space=vmem, size = 0x1000, scoped, tag = 'output window, operand 0, single buffered']
    #allocation3 [shape = 's32[1]{0}', space=sflag, size = 0x4, scoped, tag = 'scoped memory for layer3net_forward.1']
    #allocation4 [shape = 'u8[4096]{0}', space=vmem, size = 0x1000, scoped, tag = 'output window, operand 1, single buffered']
    #allocation5 [shape = 's32[1]{0}', space=sflag, size = 0x4, scoped, tag = 'scoped memory for layer3net_forward.1']
    %12 = vsyncpa [#allocation3], 0
    %13 = vsyncpa [#allocation5], 0
    // Predicated region
    $region2: #{layer3net_forward.1} parent=1 // pred_check
      _
    $region3: #{layer3net_forward.1} parent=1 // pred_check_branch
      %15 = sbr.rel (0) target = $region5
    $region4: #{layer3net_forward.1} parent=1 // pred_region
      _
    $region5: #{layer3net_forward.1} parent=1 // pred_fallthru
      _
    // Predicated region
    $region6: #{layer3net_forward.1} parent=1 // pred_check
      _
    $region7: #{layer3net_forward.1} parent=1 // pred_check_branch
      %17 = sbr.rel (0) target = $region9
    $region8: #{layer3net_forward.1} parent=1 // pred_region
      _
    $region9: #{layer3net_forward.1} parent=1 // pred_fallthru
      _
    // Predicated region
    $region10: #{layer3net_forward.1} parent=1 // pred_check
      _
    $region11: #{layer3net_forward.1} parent=1 // pred_check_branch
      %19 = sbr.rel (0) target = $region13
    $region12: #{layer3net_forward.1} parent=1 // pred_region
      _
    $region13: #{layer3net_forward.1} parent=1 // pred_fallthru
      _
    // Predicated region
    $region14: #{layer3net_forward.1} parent=1 // pred_check
      _
    $region15: #{layer3net_forward.1} parent=1 // pred_check_branch
      %21 = sbr.rel (0) target = $region17
    $region16: #{layer3net_forward.1} parent=1 // pred_region
      _
    $region17: #{layer3net_forward.1} parent=1 // pred_fallthru
      _
    // Predicated region
    $region18: #{layer3net_forward.1} parent=1 // pred_check
      _
    $region19: #{layer3net_forward.1} parent=1 // pred_check_branch
      %23 = sbr.rel (0) target = $region21
    $region20: #{layer3net_forward.1} parent=1 // pred_region
      _
    $region21: #{layer3net_forward.1} parent=1 // pred_fallthru
      _
    %v25 = vld [vmem:[%s0] sm:$0xf]
    %v26 = vld [vmem:[%s1] sm:$0xf]
    %v27 = vld [vmem:[%s1 + $0x4] sm:$0xf]
    %v28 = vld [vmem:[%s1 + $0x8] sm:$0xf]
    %v29 = vld [vmem:[%s1 + $0xc] sm:$0xf]
    %v30 = vld [vmem:[%s1 + $0x10] sm:$0xf]
    %v31 = vld [vmem:[%s1 + $0x14] sm:$0xf]
    %v32 = vld [vmem:[%s1 + $0x18] sm:$0xf]
    %v33 = vld [vmem:[%s1 + $0x1c] sm:$0xf]
    %v34 = vld [vmem:[%s1 + $0x20] sm:$0xf]
    %v35 = vld [vmem:[%s1 + $0x24] sm:$0xf]
    %v36 = vld [vmem:[%s1 + $0x28] sm:$0xf]
    %v37 = vld [vmem:[%s1 + $0x2c] sm:$0xf]
    %v38 = vld [vmem:[%s1 + $0x30] sm:$0xf]
    %v39 = vld [vmem:[%s1 + $0x34] sm:$0xf]
    %v40 = vld [vmem:[%s1 + $0x38] sm:$0xf]
    %v41 = vld [vmem:[%s1 + $0x3c] sm:$0xf]
    %v42 = vld [vmem:[%s2] sm:$0x1]
    %v44 = vlaneseq
    %v45 = vshrl.u32 %v44, 7
    %v46 = vsub.s32 0, %v45
    %v47 = vrot.slane %v42, %v46
    %v65 = vunpack.c.l.b16 %v26
    %v66 = vunpack.c.l.b16 %v27
    %v67 = vunpack.c.l.b16 %v28
    %v68 = vunpack.c.l.b16 %v29
    %v69 = vunpack.c.l.b16 %v30
    %v70 = vunpack.c.l.b16 %v31
    %v71 = vunpack.c.l.b16 %v32
    %v72 = vunpack.c.l.b16 %v33
    %v73 = vunpack.c.l.b16 %v34
    %v74 = vunpack.c.l.b16 %v35
    %v75 = vunpack.c.l.b16 %v36
    %v76 = vunpack.c.l.b16 %v37
    %v77 = vunpack.c.l.b16 %v38
    %v78 = vunpack.c.l.b16 %v39
    %v79 = vunpack.c.l.b16 %v40
    %v80 = vunpack.c.l.b16 %v41
    %v81 = vpack.c.b16 %v66, %v65
    %v82 = vpack.c.b16 %v68, %v67
    %v83 = vpack.c.b16 %v70, %v69
    %v84 = vpack.c.b16 %v72, %v71
    %v85 = vpack.c.b16 %v74, %v73
    %v86 = vpack.c.b16 %v76, %v75
    %v87 = vpack.c.b16 %v78, %v77
    %v88 = vpack.c.b16 %v80, %v79
    %97 = vmatprep.subr.bf16.mxu0 0
    %98 = vmatpush1.bf16.msra.mxu0 %v81
    %99 = vmatprep.subr.bf16.mxu0 0
    %100 = vmatpush1.bf16.msra.mxu0 %v82
    %101 = vmatprep.subr.bf16.mxu0 0
    %102 = vmatpush1.bf16.msra.mxu0 %v83
    %103 = vmatprep.subr.bf16.mxu0 0
    %104 = vmatpush1.bf16.msra.mxu0 %v84
    %105 = vmatprep.subr.bf16.mxu0 0
    %106 = vmatpush1.bf16.msra.mxu0 %v85
    %107 = vmatprep.subr.bf16.mxu0 0
    %108 = vmatpush1.bf16.msra.mxu0 %v86
    %109 = vmatprep.subr.bf16.mxu0 0
    %110 = vmatpush1.bf16.msra.mxu0 %v87
    %111 = vmatprep.subr.bf16.mxu0 0
    %112 = vmatpush1.bf16.msra.mxu0 %v88
    %113 = vmatprep.subr.bf16.mxu0 0
    %114 = vmatpush1.bf16.msra.mxu0 0
    %115 = vmatprep.subr.bf16.mxu0 0
    %116 = vmatpush1.bf16.msra.mxu0 0
    %117 = vmatprep.subr.bf16.mxu0 0
    %118 = vmatpush1.bf16.msra.mxu0 0
    %119 = vmatprep.subr.bf16.mxu0 0
    %120 = vmatpush1.bf16.msra.mxu0 0
    %121 = vmatprep.subr.bf16.mxu0 0
    %122 = vmatpush1.bf16.msra.mxu0 0
    %123 = vmatprep.subr.bf16.mxu0 0
    %124 = vmatpush1.bf16.msra.mxu0 0
    %125 = vmatprep.subr.bf16.mxu0 0
    %126 = vmatpush1.bf16.msra.mxu0 0
    %127 = vmatprep.subr.bf16.mxu0 0
    %128 = vmatpush1.bf16.msra.mxu0 0
    %129 = vmatprep.mubr.bf16.mxu0 0
    %130 = vmatmul.mubr.bf16.gmra.mrb[0].mxu0 %v25
    %v131 = vpop.f32.mrb[0].mxu0
    %v132 = vadd.f32 %v47, %v131
    %v133 = vpop.f32.mrb[0].mxu0
    %v134 = vpop.f32.mrb[0].mxu0
    %v135 = vpop.f32.mrb[0].mxu0
    %136 = vdwg.mxu0
    %v137 = vxor.u32 %v132, 2147483648
    %v138 = vmul.f32 %v137, 1.442695
    %v139 = vpow.pop %v138
    %v140 = vadd.f32 %v139, 1.0
    %v141 = vrcp.pop %v140
    %v142 = vmul.f32 1.0, %v141
    %143 = vst [vmem:[#allocation4] sm:$0xff] %v142
    %v144 = vpack.c.bf16 %v142, %v142
    %v145 = vld [vmem:[%s3] sm:$0xf]
    %v146 = vld [vmem:[%s3 + $0x4] sm:$0xf]
    %v147 = vld [vmem:[%s3 + $0x8] sm:$0xf]
    %v148 = vld [vmem:[%s3 + $0xc] sm:$0xf]
    %v149 = vld [vmem:[%s3 + $0x10] sm:$0xf]
    %v150 = vld [vmem:[%s3 + $0x14] sm:$0xf]
    %v151 = vld [vmem:[%s3 + $0x18] sm:$0xf]
    %v152 = vld [vmem:[%s3 + $0x1c] sm:$0xf]
    %v153 = vld [vmem:[%s3 + $0x20] sm:$0xf]
    %v154 = vld [vmem:[%s3 + $0x24] sm:$0xf]
    %v155 = vld [vmem:[%s3 + $0x28] sm:$0xf]
    %v156 = vld [vmem:[%s3 + $0x2c] sm:$0xf]
    %v157 = vld [vmem:[%s3 + $0x30] sm:$0xf]
    %v158 = vld [vmem:[%s3 + $0x34] sm:$0xf]
    %v159 = vld [vmem:[%s3 + $0x38] sm:$0xf]
    %v160 = vld [vmem:[%s3 + $0x3c] sm:$0xf]
    %v161 = vld [vmem:[%s4] sm:$0x1]
    %v163 = vlaneseq
    %v164 = vshrl.u32 %v163, 7
    %v165 = vsub.s32 0, %v164
    %v166 = vrot.slane %v161, %v165
    %v184 = vunpack.c.l.b16 %v145
    %v185 = vunpack.c.l.b16 %v146
    %v186 = vunpack.c.l.b16 %v147
    %v187 = vunpack.c.l.b16 %v148
    %v188 = vunpack.c.l.b16 %v149
    %v189 = vunpack.c.l.b16 %v150
    %v190 = vunpack.c.l.b16 %v151
    %v191 = vunpack.c.l.b16 %v152
    %v192 = vunpack.c.l.b16 %v153
    %v193 = vunpack.c.l.b16 %v154
    %v194 = vunpack.c.l.b16 %v155
    %v195 = vunpack.c.l.b16 %v156
    %v196 = vunpack.c.l.b16 %v157
    %v197 = vunpack.c.l.b16 %v158
    %v198 = vunpack.c.l.b16 %v159
    %v199 = vunpack.c.l.b16 %v160
    %v200 = vpack.c.b16 %v185, %v184
    %v201 = vpack.c.b16 %v187, %v186
    %v202 = vpack.c.b16 %v189, %v188
    %v203 = vpack.c.b16 %v191, %v190
    %v204 = vpack.c.b16 %v193, %v192
    %v205 = vpack.c.b16 %v195, %v194
    %v206 = vpack.c.b16 %v197, %v196
    %v207 = vpack.c.b16 %v199, %v198
    %216 = vmatprep.subr.bf16.mxu0 0
    %217 = vmatpush1.bf16.msra.mxu0 %v200
    %218 = vmatprep.subr.bf16.mxu0 0
    %219 = vmatpush1.bf16.msra.mxu0 %v201
    %220 = vmatprep.subr.bf16.mxu0 0
    %221 = vmatpush1.bf16.msra.mxu0 %v202
    %222 = vmatprep.subr.bf16.mxu0 0
    %223 = vmatpush1.bf16.msra.mxu0 %v203
    %224 = vmatprep.subr.bf16.mxu0 0
    %225 = vmatpush1.bf16.msra.mxu0 %v204
    %226 = vmatprep.subr.bf16.mxu0 0
    %227 = vmatpush1.bf16.msra.mxu0 %v205
    %228 = vmatprep.subr.bf16.mxu0 0
    %229 = vmatpush1.bf16.msra.mxu0 %v206
    %230 = vmatprep.subr.bf16.mxu0 0
    %231 = vmatpush1.bf16.msra.mxu0 %v207
    %232 = vmatprep.subr.bf16.mxu0 0
    %233 = vmatpush1.bf16.msra.mxu0 0
    %234 = vmatprep.subr.bf16.mxu0 0
    %235 = vmatpush1.bf16.msra.mxu0 0
    %236 = vmatprep.subr.bf16.mxu0 0
    %237 = vmatpush1.bf16.msra.mxu0 0
    %238 = vmatprep.subr.bf16.mxu0 0
    %239 = vmatpush1.bf16.msra.mxu0 0
    %240 = vmatprep.subr.bf16.mxu0 0
    %241 = vmatpush1.bf16.msra.mxu0 0
    %242 = vmatprep.subr.bf16.mxu0 0
    %243 = vmatpush1.bf16.msra.mxu0 0
    %244 = vmatprep.subr.bf16.mxu0 0
    %245 = vmatpush1.bf16.msra.mxu0 0
    %246 = vmatprep.subr.bf16.mxu0 0
    %247 = vmatpush1.bf16.msra.mxu0 0
    %248 = vmatprep.mubr.bf16.mxu0 0
    %249 = vmatmul.mubr.bf16.gmra.mrb[0].mxu0 %v144
    %v250 = vpop.f32.mrb[0].mxu0
    %v251 = vadd.f32 %v166, %v250
    %v252 = vpop.f32.mrb[0].mxu0
    %v253 = vpop.f32.mrb[0].mxu0
    %v254 = vpop.f32.mrb[0].mxu0
    %255 = vdwg.mxu0
    %256 = vst [vmem:[#allocation2] sm:$0xff] %v251
    // Predicated region
    $region22: #{layer3net_forward.1} parent=1 // pred_check
      _
    $region23: #{layer3net_forward.1} parent=1 // pred_check_branch
      %258 = sbr.rel (0) target = $region25
    $region24: #{layer3net_forward.1} parent=1 // pred_region
      %s260 = ssub.s32 128, 128
      %261 = vsyncadd [#allocation3], %s260
      %s263 = sshll.u32 [#allocation2], 4
      %s264 = int_to_ptr.vmem [resolvable:$true] %s263
      %266 = dma.vmem_to_hbm [thread:$0]  %s264, 128, %s5, [#allocation3]
    $region25: #{layer3net_forward.1} parent=1 // pred_fallthru
      _
    // Predicated region
    $region26: #{layer3net_forward.1} parent=1 // pred_check
      _
    $region27: #{layer3net_forward.1} parent=1 // pred_check_branch
      %268 = sbr.rel (0) target = $region29
    $region28: #{layer3net_forward.1} parent=1 // pred_region
      %s270 = ssub.s32 128, 128
      %271 = vsyncadd [#allocation5], %s270
      %s273 = sshll.u32 [#allocation4], 4
      %s274 = int_to_ptr.vmem [resolvable:$true] %s273
      %276 = dma.vmem_to_hbm [thread:$0]  %s274, 128, %s6, [#allocation5]
    $region29: #{layer3net_forward.1} parent=1 // pred_fallthru
      _
    // Predicated region
    $region30: #{layer3net_forward.1} parent=1 // pred_check
      _
    $region31: #{layer3net_forward.1} parent=1 // pred_check_branch
      %278 = sbr.rel (0) target = $region33
    $region32: #{layer3net_forward.1} parent=1 // pred_region
      %279 = dma.done [#allocation3], 128
    $region33: #{layer3net_forward.1} parent=1 // pred_fallthru
      _
    // Predicated region
    $region34: #{layer3net_forward.1} parent=1 // pred_check
      _
    $region35: #{layer3net_forward.1} parent=1 // pred_check_branch
      %281 = sbr.rel (0) target = $region37
    $region36: #{layer3net_forward.1} parent=1 // pred_region
      %282 = dma.done [#allocation5], 128
    $region37: #{layer3net_forward.1} parent=1 // pred_fallthru
      _
    %283 = vsyncpa [#allocation3], 1
    %284 = vsyncpa [#allocation5], 1

</llo_original>
